<compile_context>
chip_gen: v5e
topology: v5e:2x2
jax: 0.10.0
libtpu: 0.0.40
codegen_flags: <defaults>
</compile_context>

<pallas_src>
import functools
import math

import jax
import jax.numpy as jnp
from jax import lax
from jax.experimental import pallas as pl
from jax.experimental.pallas import tpu as pltpu

LN_EPS = 1e-5                       # PyTorch nn.LayerNorm default
_VMEM_BUDGET_BYTES = 40 << 20       # target total VMEM footprint
_PIPELINE_MODE_OK = True            # flips off if this build rejects pl.Buffered


def _round_up(v, m):
    return -(-v // m) * m


def _mixer_kernel(x_ref, g_ref, b_ref, w1_ref, b1_ref, w2_ref, b2_ref, o_ref,
                  *, h_chunk, n_chunks):
    """One (TR, D) row tile of: x + W2(relu(W1(LN(x)) + b1)) + b2."""
    x = x_ref[...].astype(jnp.float32)

    # LayerNorm over the feature (lane) axis; biased variance like PyTorch.
    mu = jnp.mean(x, axis=-1, keepdims=True)
    xc = x - mu
    var = jnp.mean(xc * xc, axis=-1, keepdims=True)
    y = (xc * lax.rsqrt(var + LN_EPS)) * g_ref[...] + b_ref[...]   # f32 VPU/EUP
    y_mx = y.astype(w1_ref.dtype)                                  # bf16 into MXU

    # MLP chunked over the hidden dim (static slices of resident weights are
    # free); bounds the live (TR, Hc) intermediate for large mlp_ratio.
    z = jnp.zeros(x.shape, jnp.float32)
    for c in range(n_chunks):
        lo = c * h_chunk
        hi = lo + h_chunk
        h = jnp.dot(y_mx, w1_ref[:, lo:hi], preferred_element_type=jnp.float32)
        h = jnp.maximum(h + b1_ref[:, lo:hi], 0.0)                 # bias+ReLU f32
        z = z + jnp.dot(h.astype(w2_ref.dtype), w2_ref[lo:hi, :],
                        preferred_element_type=jnp.float32)

    # Residual add in f32; store in the input dtype (lane-dense vst).
    o_ref[...] = (x + z + b2_ref[...]).astype(o_ref.dtype)


def prepare_feature_mixer_params(ln_gamma, ln_beta, w1, b1, w2, b2,
                                 *, mxu_dtype=jnp.bfloat16):
    """One-time param prep: transpose weights and cast them to the MXU dtype.

    PyTorch layouts: w1 (H, D), w2 (D, H).  Stored here as W1^T (D, H) and
    W2^T (H, D) so both matmuls are plain row-major MXU contractions.
    """
    H, D = w1.shape
    return dict(
        gamma=jnp.asarray(ln_gamma, jnp.float32).reshape(1, D),
        beta=jnp.asarray(ln_beta, jnp.float32).reshape(1, D),
        w1t=jnp.asarray(w1, jnp.float32).T.astype(mxu_dtype),   # (D, H)
        b1=jnp.asarray(b1, jnp.float32).reshape(1, H),
        w2t=jnp.asarray(w2, jnp.float32).T.astype(mxu_dtype),   # (H, D)
        b2=jnp.asarray(b2, jnp.float32).reshape(1, D),
    )


def _pick_h_chunk(H):
    if H <= 1024:
        return H
    for c in (1024, 768, 512, 384, 256, 128):
        if H % c == 0:
            return c
    return H


def _choose_block_rows(R, D, H, Hc, in_bytes, out_bytes, w_bytes):
    """Row tile sized from the full VMEM footprint, not just D."""
    fixed = 2 * D * H * w_bytes + (3 * D + H) * 4          # weights + biases/LN
    per_row = (2 * D * in_bytes                             # x tile, 2 buffers
               + 2 * D * out_bytes                          # out tile, 2 buffers
               + 16 * D                                     # f32 temps (x,xc,y,z)
               + 2 * D                                      # y in MXU dtype
               + 6 * Hc)                                    # h chunk f32 + bf16
    avail = max(_VMEM_BUDGET_BYTES - fixed, 1 << 20)
    tr = avail // per_row
    # Target ~4-8 MiB of streamed x+out per grid step.
    stream_cap = max(4096, (6 << 20) // max(1, D * (in_bytes + out_bytes)))
    tr = min(tr, stream_cap)
    tr = min(tr, _round_up(R, 8))
    if R > 8:   # >=2 grid steps so both v7x TensorCores get work
        tr = min(tr, _round_up((R + 1) // 2, 8))
    tr = max(8, (tr // 8) * 8)
    footprint = fixed + tr * per_row
    return int(tr), int(footprint)


def _invariant_spec(shape, use_buffered):
    idx = lambda i: (0,) * len(shape)
    if use_buffered:
        # Grid-invariant operand: one VMEM copy (no double-buffering).
        return pl.BlockSpec(shape, idx, pipeline_mode=pl.Buffered(1))
    return pl.BlockSpec(shape, idx)


def feature_mixer_forward(x, params, *, block_rows=None):
    """Fused FeatureMixerLayer forward. x: (..., D); returns same shape/dtype."""
    global _PIPELINE_MODE_OK
    orig_shape = x.shape
    D = orig_shape[-1]
    H = params["w1t"].shape[1]
    assert params["w1t"].shape[0] == D
    R = math.prod(orig_shape[:-1]) if len(orig_shape) > 1 else 1

    x2 = x.reshape(R, D)                       # native dtype, no extra HBM pass
    in_bytes = x2.dtype.itemsize
    out_bytes = in_bytes                        # output dtype follows input
    w_bytes = params["w1t"].dtype.itemsize

    Hc = _pick_h_chunk(H)
    TR, footprint = _choose_block_rows(R, D, H, Hc, in_bytes, out_bytes, w_bytes)
    if block_rows is not None:
        TR = max(8, min(_round_up(block_rows, 8), _round_up(R, 8)))
        footprint = max(footprint, 2 * D * H * w_bytes + TR * 32 * (D + Hc))
    vmem_limit = int(min(max(footprint * 1.3 + (2 << 20), 32 << 20), 128 << 20))

    grid = (pl.cdiv(R, TR),)                   # partial last block is masked

    def _run(use_buffered):
        in_specs = [
            pl.BlockSpec((TR, D), lambda i: (i, 0)),      # x rows (streamed)
            _invariant_spec((1, D), use_buffered),        # LN gamma
            _invariant_spec((1, D), use_buffered),        # LN beta
            _invariant_spec((D, H), use_buffered),        # W1^T (bf16)
            _invariant_spec((1, H), use_buffered),        # b1
            _invariant_spec((H, D), use_buffered),        # W2^T (bf16)
            _invariant_spec((1, D), use_buffered),        # b2
        ]
        return pl.pallas_call(
            functools.partial(_mixer_kernel, h_chunk=Hc, n_chunks=H // Hc),
            out_shape=jax.ShapeDtypeStruct((R, D), x.dtype),
            grid=grid,
            in_specs=in_specs,
            out_specs=pl.BlockSpec((TR, D), lambda i: (i, 0)),
            compiler_params=pltpu.CompilerParams(
                dimension_semantics=("parallel",),
                vmem_limit_bytes=vmem_limit),
        )(x2, params["gamma"], params["beta"], params["w1t"], params["b1"],
          params["w2t"], params["b2"])

    try:
        out = _run(_PIPELINE_MODE_OK)
    except Exception:
        if not _PIPELINE_MODE_OK:
            raise
        _PIPELINE_MODE_OK = False              # this build rejects pl.Buffered
        out = _run(False)

    return out.reshape(orig_shape)


if __name__ == "__main__":
    key = jax.random.PRNGKey(0)
    B, S, D = 2, 8, 32          # batch, tokens, in_dim
    H = D * 1                   # mlp_ratio = 1

    kx, k1, k2 = jax.random.split(key, 3)
    x = jax.random.normal(kx, (B, S, D), dtype=jnp.float32)

    # Parameter init mirroring the PyTorch module.
    ln_gamma = jnp.ones((D,), jnp.float32)
    ln_beta = jnp.zeros((D,), jnp.float32)
    w1 = 0.02 * jax.random.truncated_normal(k1, -2.0, 2.0, (H, D), jnp.float32)
    b1 = jnp.zeros((H,), jnp.float32)
    w2 = 0.02 * jax.random.truncated_normal(k2, -2.0, 2.0, (D, H), jnp.float32)
    b2 = jnp.zeros((D,), jnp.float32)

    params = prepare_feature_mixer_params(ln_gamma, ln_beta, w1, b1, w2, b2)

    def ref_forward(xr):   # pure-JAX f32 reference == PyTorch forward
        mu = jnp.mean(xr, axis=-1, keepdims=True)
        var = jnp.mean((xr - mu) ** 2, axis=-1, keepdims=True)
        xn = (xr - mu) / jnp.sqrt(var + LN_EPS)
        y = xn * ln_gamma + ln_beta
        h = jnp.maximum(y @ w1.T + b1, 0.0)
        return xr + (h @ w2.T + b2)

    # Main check (f32 input, grid of 2 row tiles).
    out = jax.block_until_ready(feature_mixer_forward(x, params))
    ref = ref_forward(x)
    assert out.shape == x.shape and out.dtype == x.dtype
    assert jnp.allclose(out, ref, rtol=2e-2, atol=2e-2), \
        float(jnp.max(jnp.abs(out - ref)))

    # Ragged row count -> exercises the masked partial last row block.
    x_rag = jax.random.normal(jax.random.PRNGKey(1), (3, 5, D), jnp.float32)
    out_rag = jax.block_until_ready(feature_mixer_forward(x_rag, params))
    assert jnp.allclose(out_rag, ref_forward(x_rag), rtol=2e-2, atol=2e-2)

    # bf16 input path: x streamed/stored in bf16, math in f32.
    x_bf = x.astype(jnp.bfloat16)
    out_bf = jax.block_until_ready(feature_mixer_forward(x_bf, params))
    assert out_bf.dtype == jnp.bfloat16
    assert jnp.allclose(out_bf.astype(jnp.float32),
                        ref_forward(x_bf.astype(jnp.float32)),
                        rtol=5e-2, atol=5e-2)

    print("KERNEL_OK")
</pallas_src>

<mosaic_0001>
module attributes {stable_mosaic.version = 11 : i64} {
  func.func @_mixer_kernel(%arg0: i32, %arg1: memref<8x32xf32, #tpu.memory_space<vmem>>, %arg2: memref<1x32xf32, #tpu.memory_space<vmem>>, %arg3: memref<1x32xf32, #tpu.memory_space<vmem>>, %arg4: memref<32x32xbf16, #tpu.memory_space<vmem>>, %arg5: memref<1x32xf32, #tpu.memory_space<vmem>>, %arg6: memref<32x32xbf16, #tpu.memory_space<vmem>>, %arg7: memref<1x32xf32, #tpu.memory_space<vmem>>, %arg8: memref<8x32xf32, #tpu.memory_space<vmem>>) attributes {dimension_semantics = [#tpu.dimension_semantics<parallel>], iteration_bounds = array<i64: 2>, scalar_prefetch = 0 : i64, scratch_operands = 0 : i64, tpu.core_type = #tpu.core_type<tc>, window_params = [{transform_indices = @transform_0, window_bounds = array<i64: 8, 32>}, {pipeline_mode = #tpu.pipeline_mode<synchronous>, transform_indices = @transform_1, window_bounds = array<i64: 1, 32>}, {pipeline_mode = #tpu.pipeline_mode<synchronous>, transform_indices = @transform_2, window_bounds = array<i64: 1, 32>}, {pipeline_mode = #tpu.pipeline_mode<synchronous>, transform_indices = @transform_3, window_bounds = array<i64: 32, 32>}, {pipeline_mode = #tpu.pipeline_mode<synchronous>, transform_indices = @transform_4, window_bounds = array<i64: 1, 32>}, {pipeline_mode = #tpu.pipeline_mode<synchronous>, transform_indices = @transform_5, window_bounds = array<i64: 32, 32>}, {pipeline_mode = #tpu.pipeline_mode<synchronous>, transform_indices = @transform_6, window_bounds = array<i64: 1, 32>}, {transform_indices = @transform_7, window_bounds = array<i64: 8, 32>}]} {
    %c0 = arith.constant 0 : index
    %c0_0 = arith.constant 0 : index
    %0 = vector.load %arg1[%c0, %c0_0] : memref<8x32xf32, #tpu.memory_space<vmem>>, vector<8x32xf32>
    %cst = arith.constant dense<0.000000e+00> : vector<8xf32>
    %1 = vector.multi_reduction <add>, %0, %cst [1] : vector<8x32xf32> to vector<8xf32>
    %2 = vector.shape_cast %1 : vector<8xf32> to vector<8x1xf32>
    %cst_1 = arith.constant 3.200000e+01 : f32
    %3 = vector.broadcast %cst_1 : f32 to vector<8x1xf32>
    %4 = arith.divf %2, %3 : vector<8x1xf32>
    %5 = vector.broadcast %4 : vector<8x1xf32> to vector<8x32xf32>
    %6 = arith.subf %0, %5 : vector<8x32xf32>
    %7 = arith.mulf %6, %6 : vector<8x32xf32>
    %cst_2 = arith.constant dense<0.000000e+00> : vector<8xf32>
    %8 = vector.multi_reduction <add>, %7, %cst_2 [1] : vector<8x32xf32> to vector<8xf32>
    %9 = vector.shape_cast %8 : vector<8xf32> to vector<8x1xf32>
    %cst_3 = arith.constant 3.200000e+01 : f32
    %10 = vector.broadcast %cst_3 : f32 to vector<8x1xf32>
    %11 = arith.divf %9, %10 : vector<8x1xf32>
    %cst_4 = arith.constant 9.99999974E-6 : f32
    %12 = vector.broadcast %cst_4 : f32 to vector<8x1xf32>
    %13 = arith.addf %11, %12 : vector<8x1xf32>
    %14 = math.rsqrt %13 : vector<8x1xf32>
    %15 = vector.broadcast %14 : vector<8x1xf32> to vector<8x32xf32>
    %16 = arith.mulf %6, %15 : vector<8x32xf32>
    %c0_5 = arith.constant 0 : index
    %c0_6 = arith.constant 0 : index
    %17 = vector.load %arg2[%c0_5, %c0_6] : memref<1x32xf32, #tpu.memory_space<vmem>>, vector<1x32xf32>
    %18 = vector.broadcast %17 : vector<1x32xf32> to vector<8x32xf32>
    %19 = arith.mulf %16, %18 : vector<8x32xf32>
    %c0_7 = arith.constant 0 : index
    %c0_8 = arith.constant 0 : index
    %20 = vector.load %arg3[%c0_7, %c0_8] : memref<1x32xf32, #tpu.memory_space<vmem>>, vector<1x32xf32>
    %21 = vector.broadcast %20 : vector<1x32xf32> to vector<8x32xf32>
    %22 = arith.addf %19, %21 : vector<8x32xf32>
    %23 = arith.truncf %22 : vector<8x32xf32> to vector<8x32xbf16>
    %cst_9 = arith.constant 0.000000e+00 : f32
    %24 = vector.broadcast %cst_9 : f32 to vector<8x32xf32>
    %c0_10 = arith.constant 0 : index
    %c0_11 = arith.constant 0 : index
    %25 = vector.load %arg4[%c0_10, %c0_11] : memref<32x32xbf16, #tpu.memory_space<vmem>>, vector<32x32xbf16>
    %cst_12 = arith.constant dense<0.000000e+00> : vector<8x32xf32>
    %26 = tpu.matmul %23, %25, %cst_12 {dimension_numbers = #tpu.dot_dimension_numbers<[1], [0], [0], [1], [0, 0, 1, 1], [], []>} : vector<8x32xbf16>, vector<32x32xbf16>, vector<8x32xf32> -> vector<8x32xf32>
    %c0_13 = arith.constant 0 : index
    %c0_14 = arith.constant 0 : index
    %27 = vector.load %arg5[%c0_13, %c0_14] : memref<1x32xf32, #tpu.memory_space<vmem>>, vector<1x32xf32>
    %28 = vector.broadcast %27 : vector<1x32xf32> to vector<8x32xf32>
    %29 = arith.addf %26, %28 : vector<8x32xf32>
    %cst_15 = arith.constant 0.000000e+00 : f32
    %30 = vector.broadcast %cst_15 : f32 to vector<8x32xf32>
    %31 = arith.maximumf %29, %30 : vector<8x32xf32>
    %32 = arith.truncf %31 : vector<8x32xf32> to vector<8x32xbf16>
    %c0_16 = arith.constant 0 : index
    %c0_17 = arith.constant 0 : index
    %33 = vector.load %arg6[%c0_16, %c0_17] : memref<32x32xbf16, #tpu.memory_space<vmem>>, vector<32x32xbf16>
    %cst_18 = arith.constant dense<0.000000e+00> : vector<8x32xf32>
    %34 = tpu.matmul %32, %33, %cst_18 {dimension_numbers = #tpu.dot_dimension_numbers<[1], [0], [0], [1], [0, 0, 1, 1], [], []>} : vector<8x32xbf16>, vector<32x32xbf16>, vector<8x32xf32> -> vector<8x32xf32>
    %35 = arith.addf %24, %34 : vector<8x32xf32>
    %36 = arith.addf %0, %35 : vector<8x32xf32>
    %c0_19 = arith.constant 0 : index
    %c0_20 = arith.constant 0 : index
    %37 = vector.load %arg7[%c0_19, %c0_20] : memref<1x32xf32, #tpu.memory_space<vmem>>, vector<1x32xf32>
    %38 = vector.broadcast %37 : vector<1x32xf32> to vector<8x32xf32>
    %39 = arith.addf %36, %38 : vector<8x32xf32>
    %c0_21 = arith.constant 0 : index
    %c0_22 = arith.constant 0 : index
    %40 = vector.load %arg8[%c0_21, %c0_22] : memref<8x32xf32, #tpu.memory_space<vmem>>, vector<8x32xf32>
    tpu.vector_store %arg8[%c0_21, %c0_22], %39 {strides = array<i32>} : memref<8x32xf32, #tpu.memory_space<vmem>>, vector<8x32xf32>,
    return
  }
  func.func @transform_0(%arg0: i32) -> (i32, i32) {
    %c0_i32 = arith.constant 0 : i32
    %c0_i32_0 = arith.constant 0 : i32
    return %arg0, %c0_i32 : i32, i32
  }
  func.func @transform_1(%arg0: i32) -> (i32, i32) {
    %c0_i32 = arith.constant 0 : i32
    %c0_i32_0 = arith.constant 0 : i32
    %c0_i32_1 = arith.constant 0 : i32
    return %c0_i32, %c0_i32_0 : i32, i32
  }
  func.func @transform_2(%arg0: i32) -> (i32, i32) {
    %c0_i32 = arith.constant 0 : i32
    %c0_i32_0 = arith.constant 0 : i32
    %c0_i32_1 = arith.constant 0 : i32
    return %c0_i32, %c0_i32_0 : i32, i32
  }
  func.func @transform_3(%arg0: i32) -> (i32, i32) {
    %c0_i32 = arith.constant 0 : i32
    %c0_i32_0 = arith.constant 0 : i32
    %c0_i32_1 = arith.constant 0 : i32
    return %c0_i32, %c0_i32_0 : i32, i32
  }
  func.func @transform_4(%arg0: i32) -> (i32, i32) {
    %c0_i32 = arith.constant 0 : i32
    %c0_i32_0 = arith.constant 0 : i32
    %c0_i32_1 = arith.constant 0 : i32
    return %c0_i32, %c0_i32_0 : i32, i32
  }
  func.func @transform_5(%arg0: i32) -> (i32, i32) {
    %c0_i32 = arith.constant 0 : i32
    %c0_i32_0 = arith.constant 0 : i32
    %c0_i32_1 = arith.constant 0 : i32
    return %c0_i32, %c0_i32_0 : i32, i32
  }
  func.func @transform_6(%arg0: i32) -> (i32, i32) {
    %c0_i32 = arith.constant 0 : i32
    %c0_i32_0 = arith.constant 0 : i32
    %c0_i32_1 = arith.constant 0 : i32
    return %c0_i32, %c0_i32_0 : i32, i32
  }
  func.func @transform_7(%arg0: i32) -> (i32, i32) {
    %c0_i32 = arith.constant 0 : i32
    %c0_i32_0 = arith.constant 0 : i32
    return %arg0, %c0_i32 : i32, i32
  }
}

module attributes {stable_mosaic.version = 11 : i64} {
  func.func @_mixer_kernel(%arg0: i32, %arg1: memref<8x32xf32, #tpu.memory_space<vmem>>, %arg2: memref<1x32xf32, #tpu.memory_space<vmem>>, %arg3: memref<1x32xf32, #tpu.memory_space<vmem>>, %arg4: memref<32x32xbf16, #tpu.memory_space<vmem>>, %arg5: memref<1x32xf32, #tpu.memory_space<vmem>>, %arg6: memref<32x32xbf16, #tpu.memory_space<vmem>>, %arg7: memref<1x32xf32, #tpu.memory_space<vmem>>, %arg8: memref<8x32xf32, #tpu.memory_space<vmem>>) attributes {dimension_semantics = [#tpu.dimension_semantics<parallel>], iteration_bounds = array<i64: 2>, scalar_prefetch = 0 : i64, scratch_operands = 0 : i64, tpu.core_type = #tpu.core_type<tc>, window_params = [{transform_indices = @transform_0, window_bounds = array<i64: 8, 32>}, {pipeline_mode = #tpu.pipeline_mode<synchronous>, transform_indices = @transform_1, window_bounds = array<i64: 1, 32>}, {pipeline_mode = #tpu.pipeline_mode<synchronous>, transform_indices = @transform_2, window_bounds = array<i64: 1, 32>}, {pipeline_mode = #tpu.pipeline_mode<synchronous>, transform_indices = @transform_3, window_bounds = array<i64: 32, 32>}, {pipeline_mode = #tpu.pipeline_mode<synchronous>, transform_indices = @transform_4, window_bounds = array<i64: 1, 32>}, {pipeline_mode = #tpu.pipeline_mode<synchronous>, transform_indices = @transform_5, window_bounds = array<i64: 32, 32>}, {pipeline_mode = #tpu.pipeline_mode<synchronous>, transform_indices = @transform_6, window_bounds = array<i64: 1, 32>}, {transform_indices = @transform_7, window_bounds = array<i64: 8, 32>}]} {
    %c0 = arith.constant 0 : index
    %c0_0 = arith.constant 0 : index
    %0 = vector.load %arg1[%c0, %c0_0] : memref<8x32xf32, #tpu.memory_space<vmem>>, vector<8x32xf32>
    %cst = arith.constant dense<0.000000e+00> : vector<8xf32>
    %1 = vector.multi_reduction <add>, %0, %cst [1] : vector<8x32xf32> to vector<8xf32>
    %2 = vector.shape_cast %1 : vector<8xf32> to vector<8x1xf32>
    %cst_1 = arith.constant 3.200000e+01 : f32
    %3 = vector.broadcast %cst_1 : f32 to vector<8x1xf32>
    %4 = arith.divf %2, %3 : vector<8x1xf32>
    %5 = vector.broadcast %4 : vector<8x1xf32> to vector<8x32xf32>
    %6 = arith.subf %0, %5 : vector<8x32xf32>
    %7 = arith.mulf %6, %6 : vector<8x32xf32>
    %cst_2 = arith.constant dense<0.000000e+00> : vector<8xf32>
    %8 = vector.multi_reduction <add>, %7, %cst_2 [1] : vector<8x32xf32> to vector<8xf32>
    %9 = vector.shape_cast %8 : vector<8xf32> to vector<8x1xf32>
    %cst_3 = arith.constant 3.200000e+01 : f32
    %10 = vector.broadcast %cst_3 : f32 to vector<8x1xf32>
    %11 = arith.divf %9, %10 : vector<8x1xf32>
    %cst_4 = arith.constant 9.99999974E-6 : f32
    %12 = vector.broadcast %cst_4 : f32 to vector<8x1xf32>
    %13 = arith.addf %11, %12 : vector<8x1xf32>
    %14 = math.rsqrt %13 : vector<8x1xf32>
    %15 = vector.broadcast %14 : vector<8x1xf32> to vector<8x32xf32>
    %16 = arith.mulf %6, %15 : vector<8x32xf32>
    %c0_5 = arith.constant 0 : index
    %c0_6 = arith.constant 0 : index
    %17 = vector.load %arg2[%c0_5, %c0_6] : memref<1x32xf32, #tpu.memory_space<vmem>>, vector<1x32xf32>
    %18 = vector.broadcast %17 : vector<1x32xf32> to vector<8x32xf32>
    %19 = arith.mulf %16, %18 : vector<8x32xf32>
    %c0_7 = arith.constant 0 : index
    %c0_8 = arith.constant 0 : index
    %20 = vector.load %arg3[%c0_7, %c0_8] : memref<1x32xf32, #tpu.memory_space<vmem>>, vector<1x32xf32>
    %21 = vector.broadcast %20 : vector<1x32xf32> to vector<8x32xf32>
    %22 = arith.addf %19, %21 : vector<8x32xf32>
    %23 = arith.truncf %22 : vector<8x32xf32> to vector<8x32xbf16>
    %cst_9 = arith.constant 0.000000e+00 : f32
    %24 = vector.broadcast %cst_9 : f32 to vector<8x32xf32>
    %c0_10 = arith.constant 0 : index
    %c0_11 = arith.constant 0 : index
    %25 = vector.load %arg4[%c0_10, %c0_11] : memref<32x32xbf16, #tpu.memory_space<vmem>>, vector<32x32xbf16>
    %cst_12 = arith.constant dense<0.000000e+00> : vector<8x32xf32>
    %26 = tpu.matmul %23, %25, %cst_12 {dimension_numbers = #tpu.dot_dimension_numbers<[1], [0], [0], [1], [0, 0, 1, 1], [], []>} : vector<8x32xbf16>, vector<32x32xbf16>, vector<8x32xf32> -> vector<8x32xf32>
    %c0_13 = arith.constant 0 : index
    %c0_14 = arith.constant 0 : index
    %27 = vector.load %arg5[%c0_13, %c0_14] : memref<1x32xf32, #tpu.memory_space<vmem>>, vector<1x32xf32>
    %28 = vector.broadcast %27 : vector<1x32xf32> to vector<8x32xf32>
    %29 = arith.addf %26, %28 : vector<8x32xf32>
    %cst_15 = arith.constant 0.000000e+00 : f32
    %30 = vector.broadcast %cst_15 : f32 to vector<8x32xf32>
    %31 = arith.maximumf %29, %30 : vector<8x32xf32>
    %32 = arith.truncf %31 : vector<8x32xf32> to vector<8x32xbf16>
    %c0_16 = arith.constant 0 : index
    %c0_17 = arith.constant 0 : index
    %33 = vector.load %arg6[%c0_16, %c0_17] : memref<32x32xbf16, #tpu.memory_space<vmem>>, vector<32x32xbf16>
    %cst_18 = arith.constant dense<0.000000e+00> : vector<8x32xf32>
    %34 = tpu.matmul %32, %33, %cst_18 {dimension_numbers = #tpu.dot_dimension_numbers<[1], [0], [0], [1], [0, 0, 1, 1], [], []>} : vector<8x32xbf16>, vector<32x32xbf16>, vector<8x32xf32> -> vector<8x32xf32>
    %35 = arith.addf %24, %34 : vector<8x32xf32>
    %36 = arith.addf %0, %35 : vector<8x32xf32>
    %c0_19 = arith.constant 0 : index
    %c0_20 = arith.constant 0 : index
    %37 = vector.load %arg7[%c0_19, %c0_20] : memref<1x32xf32, #tpu.memory_space<vmem>>, vector<1x32xf32>
    %38 = vector.broadcast %37 : vector<1x32xf32> to vector<8x32xf32>
    %39 = arith.addf %36, %38 : vector<8x32xf32>
    %c0_21 = arith.constant 0 : index
    %c0_22 = arith.constant 0 : index
    %40 = vector.load %arg8[%c0_21, %c0_22] : memref<8x32xf32, #tpu.memory_space<vmem>>, vector<8x32xf32>
    tpu.vector_store %arg8[%c0_21, %c0_22], %39 {strides = array<i32>} : memref<8x32xf32, #tpu.memory_space<vmem>>, vector<8x32xf32>,
    return
  }
  func.func @transform_0(%arg0: i32) -> (i32, i32) {
    %c0_i32 = arith.constant 0 : i32
    %c0_i32_0 = arith.constant 0 : i32
    return %arg0, %c0_i32 : i32, i32
  }
  func.func @transform_1(%arg0: i32) -> (i32, i32) {
    %c0_i32 = arith.constant 0 : i32
    %c0_i32_0 = arith.constant 0 : i32
    %c0_i32_1 = arith.constant 0 : i32
    return %c0_i32, %c0_i32_0 : i32, i32
  }
  func.func @transform_2(%arg0: i32) -> (i32, i32) {
    %c0_i32 = arith.constant 0 : i32
    %c0_i32_0 = arith.constant 0 : i32
    %c0_i32_1 = arith.constant 0 : i32
    return %c0_i32, %c0_i32_0 : i32, i32
  }
  func.func @transform_3(%arg0: i32) -> (i32, i32) {
    %c0_i32 = arith.constant 0 : i32
    %c0_i32_0 = arith.constant 0 : i32
    %c0_i32_1 = arith.constant 0 : i32
    return %c0_i32, %c0_i32_0 : i32, i32
  }
  func.func @transform_4(%arg0: i32) -> (i32, i32) {
    %c0_i32 = arith.constant 0 : i32
    %c0_i32_0 = arith.constant 0 : i32
    %c0_i32_1 = arith.constant 0 : i32
    return %c0_i32, %c0_i32_0 : i32, i32
  }
  func.func @transform_5(%arg0: i32) -> (i32, i32) {
    %c0_i32 = arith.constant 0 : i32
    %c0_i32_0 = arith.constant 0 : i32
    %c0_i32_1 = arith.constant 0 : i32
    return %c0_i32, %c0_i32_0 : i32, i32
  }
  func.func @transform_6(%arg0: i32) -> (i32, i32) {
    %c0_i32 = arith.constant 0 : i32
    %c0_i32_0 = arith.constant 0 : i32
    %c0_i32_1 = arith.constant 0 : i32
    return %c0_i32, %c0_i32_0 : i32, i32
  }
  func.func @transform_7(%arg0: i32) -> (i32, i32) {
    %c0_i32 = arith.constant 0 : i32
    %c0_i32_0 = arith.constant 0 : i32
    return %arg0, %c0_i32 : i32, i32
  }
}

</mosaic_0001>

<llo_original>
// kernel: tpu_custom_call.1
$region0: #{tpu_custom_call.1}
  #allocation0 [shape = 'u32[]', space=smem, size = 0x4, offset = 0x4, fixed_abs, tag = 'smem constant byte address 0x4 - core index']
  #allocation1 [shape = 'u32[72,128]{1,0:T(1,128)}', space=vmem, size = 0x9000, scoped, tag = 'internal scratch']
  %s0 = inlined_call_operand.hbm [shape: f32[16,32], index: 0, kind: input, shape index: {}]
  %s1 = inlined_call_operand.hbm [shape: f32[1,32], index: 1, kind: input, shape index: {}]
  %s2 = inlined_call_operand.vmem [shape: f32[1,32], index: 2, kind: input, shape index: {}]
  %s3 = inlined_call_operand.hbm [shape: bf16[32,32], index: 3, kind: input, shape index: {}]
  %s4 = inlined_call_operand.vmem [shape: f32[1,32], index: 4, kind: input, shape index: {}]
  %s5 = inlined_call_operand.hbm [shape: bf16[32,32], index: 5, kind: input, shape index: {}]
  %s6 = inlined_call_operand.vmem [shape: f32[1,32], index: 6, kind: input, shape index: {}]
  %s7 = inlined_call_operand.hbm [shape: f32[16,32], index: 7, kind: output, shape index: {}]
  %s8 = sld [smem:[#allocation0]]
  $region77: #{tpu_custom_call.1} parent=0
    _
  %s10 = ssub.s32 1, %s8
  %s11 = scalar_select 0, %s10, %s8
  $region1: #{tpu_custom_call.1} parent=0
    #allocation2 [shape = 'u8[8192]{0}', space=vmem, size = 0x2000, scoped, tag = 'input window, operand 0']
    #allocation3 [shape = 's32[2]{0}', space=sflag, size = 0x8, scoped, tag = 'scoped memory for tpu_custom_call.1']
    #allocation4 [shape = 's32[2]{0}', space=sflag, size = 0x8, scoped, tag = 'scoped memory for tpu_custom_call.1']
    #allocation5 [shape = 'u8[512]{0}', space=vmem, size = 0x400, scoped, tag = 'input window, operand 1, single buffered']
    #allocation6 [shape = 's32[1]{0}', space=sflag, size = 0x4, scoped, tag = 'scoped memory for tpu_custom_call.1']
    #allocation7 [shape = 'u8[8192]{0}', space=vmem, size = 0x2000, scoped, tag = 'input window, operand 3, single buffered']
    #allocation8 [shape = 'u8[8192]{0}', space=vmem, size = 0x2000, scoped, tag = 'input window, operand 5, single buffered']
    #allocation9 [shape = 's32[1]{0}', space=sflag, size = 0x4, scoped, tag = 'scoped memory for tpu_custom_call.1']
    #allocation10 [shape = 'u8[8192]{0}', space=vmem, size = 0x2000, scoped, tag = 'output window, operand 0']
    %12 = vsyncpa [#allocation3], 0
    %s13 = scalar_lea.sflag [#allocation3], 1
    %14 = vsyncpa %s13, 0
    %15 = vsyncpa [#allocation6], 0
    %16 = vsyncpa [#allocation9], 0
    %17 = vsyncpa [#allocation4], 0
    %s18 = scalar_lea.sflag [#allocation4], 1
    %19 = vsyncpa %s18, 0
    loop: start=0, step=1, limit=4
    $region2: #{tpu_custom_call.1} parent=1 // loop_pre_header
      _
    $region3: #{tpu_custom_call.1} parent=1 // loop_header
      %s21 = sphi 0, %s25
      %p22 = scmp.ge.s32.totalorder %s21, 4
      %s31 = sphi 0, %s33
      %s34 = sphi 0, %s31
      %s35 = sphi 0, %s34
      %s51 = sphi 0, %s35
      %s55 = sphi 0, %s55
      %s57 = sphi 0, %s55
      %s58 = sphi 0, %s57
      %s72 = sphi 0, %s58
      %s76 = sphi 0, %s76
      %s78 = sphi 0, %s76
      %s79 = sphi 0, %s78
      %s93 = sphi 0, %s79
      %s97 = sphi 0, %s97
      %s99 = sphi 0, %s97
      %s100 = sphi 0, %s99
      %s114 = sphi 0, %s100
      %s118 = sphi 0, %s118
      %s120 = sphi 0, %s118
      %s121 = sphi 0, %s120
      %s135 = sphi 0, %s121
      %s139 = sphi 0, %s139
      %s141 = sphi 0, %s139
      %s142 = sphi 0, %s141
      %s156 = sphi 0, %s142
      %s160 = sphi 0, %s160
      %s162 = sphi 0, %s160
      %s163 = sphi 0, %s162
      %s177 = sphi 0, %s163
      %s183 = sphi 0, %s185
      %s186 = sphi 0, %s183
      %s187 = sphi 0, %s186
      %s203 = sphi 0, %s187
    $region4: #{tpu_custom_call.1} parent=1 // loop_header_branch
      %24 = sbr.rel (%p22) target = $region8
    $region5: #{tpu_custom_call.1} parent=1 // loop_body
      %s26 = ssub.s32 %s21, 1
      %s27 = ssub.s32 %s21, 2
      %s28 = sadd.s32 %s21, 1
      %s29 = ssub.s32 %s21, %s28
      %p30 = scmp.eq.s32.totalorder %s29, 0
      %s32 = sadd.s32 %s31, 1
      %s33 = scalar_select %p30, %s31, %s32
      %p36 = pneg %p30
      %p37 = scmp.eq.s32.totalorder %s21, 1
      %p38 = por %p36, %p37
      %p39 = scmp.ne.s32.totalorder %s31, %s34
      %p40 = scmp.eq.s32.totalorder %s21, 0
      %p41 = por %p39, %p40
      %p42 = scmp.ne.s32.totalorder %s31, %s34
      %p43 = scmp.eq.s32.totalorder %s26, 1
      %p44 = por %p42, %p43
      %p45 = scmp.ne.s32.totalorder %s34, %s35
      %p46 = scmp.eq.s32.totalorder %s26, 0
      %p47 = por %p45, %p46
      %p48 = scmp.ne.s32.totalorder %s34, %s35
      %p49 = scmp.eq.s32.totalorder %s27, 1
      %p50 = por %p48, %p49
      %p52 = scmp.ne.s32.totalorder %s35, %s51
      %p53 = scmp.eq.s32.totalorder %s27, 0
      %p54 = por %p52, %p53
      %s56 = sadd.s32 %s55, 1
      %p59 = scmp.eq.s32.totalorder %s21, 1
      %p60 = scmp.ne.s32.totalorder %s55, %s57
      %p61 = scmp.eq.s32.totalorder %s21, 0
      %p62 = por %p60, %p61
      %p63 = scmp.ne.s32.totalorder %s55, %s57
      %p64 = scmp.eq.s32.totalorder %s26, 1
      %p65 = por %p63, %p64
      %p66 = scmp.ne.s32.totalorder %s57, %s58
      %p67 = scmp.eq.s32.totalorder %s26, 0
      %p68 = por %p66, %p67
      %p69 = scmp.ne.s32.totalorder %s57, %s58
      %p70 = scmp.eq.s32.totalorder %s27, 1
      %p71 = por %p69, %p70
      %p73 = scmp.ne.s32.totalorder %s58, %s72
      %p74 = scmp.eq.s32.totalorder %s27, 0
      %p75 = por %p73, %p74
      %s77 = sadd.s32 %s76, 1
      %p80 = scmp.eq.s32.totalorder %s21, 1
      %p81 = scmp.ne.s32.totalorder %s76, %s78
      %p82 = scmp.eq.s32.totalorder %s21, 0
      %p83 = por %p81, %p82
      %p84 = scmp.ne.s32.totalorder %s76, %s78
      %p85 = scmp.eq.s32.totalorder %s26, 1
      %p86 = por %p84, %p85
      %p87 = scmp.ne.s32.totalorder %s78, %s79
      %p88 = scmp.eq.s32.totalorder %s26, 0
      %p89 = por %p87, %p88
      %p90 = scmp.ne.s32.totalorder %s78, %s79
      %p91 = scmp.eq.s32.totalorder %s27, 1
      %p92 = por %p90, %p91
      %p94 = scmp.ne.s32.totalorder %s79, %s93
      %p95 = scmp.eq.s32.totalorder %s27, 0
      %p96 = por %p94, %p95
      %s98 = sadd.s32 %s97, 1
      %p101 = scmp.eq.s32.totalorder %s21, 1
      %p102 = scmp.ne.s32.totalorder %s97, %s99
      %p103 = scmp.eq.s32.totalorder %s21, 0
      %p104 = por %p102, %p103
      %p105 = scmp.ne.s32.totalorder %s97, %s99
      %p106 = scmp.eq.s32.totalorder %s26, 1
      %p107 = por %p105, %p106
      %p108 = scmp.ne.s32.totalorder %s99, %s100
      %p109 = scmp.eq.s32.totalorder %s26, 0
      %p110 = por %p108, %p109
      %p111 = scmp.ne.s32.totalorder %s99, %s100
      %p112 = scmp.eq.s32.totalorder %s27, 1
      %p113 = por %p111, %p112
      %p115 = scmp.ne.s32.totalorder %s100, %s114
      %p116 = scmp.eq.s32.totalorder %s27, 0
      %p117 = por %p115, %p116
      %s119 = sadd.s32 %s118, 1
      %p122 = scmp.eq.s32.totalorder %s21, 1
      %p123 = scmp.ne.s32.totalorder %s118, %s120
      %p124 = scmp.eq.s32.totalorder %s21, 0
      %p125 = por %p123, %p124
      %p126 = scmp.ne.s32.totalorder %s118, %s120
      %p127 = scmp.eq.s32.totalorder %s26, 1
      %p128 = por %p126, %p127
      %p129 = scmp.ne.s32.totalorder %s120, %s121
      %p130 = scmp.eq.s32.totalorder %s26, 0
      %p131 = por %p129, %p130
      %p132 = scmp.ne.s32.totalorder %s120, %s121
      %p133 = scmp.eq.s32.totalorder %s27, 1
      %p134 = por %p132, %p133
      %p136 = scmp.ne.s32.totalorder %s121, %s135
      %p137 = scmp.eq.s32.totalorder %s27, 0
      %p138 = por %p136, %p137
      %s140 = sadd.s32 %s139, 1
      %p143 = scmp.eq.s32.totalorder %s21, 1
      %p144 = scmp.ne.s32.totalorder %s139, %s141
      %p145 = scmp.eq.s32.totalorder %s21, 0
      %p146 = por %p144, %p145
      %p147 = scmp.ne.s32.totalorder %s139, %s141
      %p148 = scmp.eq.s32.totalorder %s26, 1
      %p149 = por %p147, %p148
      %p150 = scmp.ne.s32.totalorder %s141, %s142
      %p151 = scmp.eq.s32.totalorder %s26, 0
      %p152 = por %p150, %p151
      %p153 = scmp.ne.s32.totalorder %s141, %s142
      %p154 = scmp.eq.s32.totalorder %s27, 1
      %p155 = por %p153, %p154
      %p157 = scmp.ne.s32.totalorder %s142, %s156
      %p158 = scmp.eq.s32.totalorder %s27, 0
      %p159 = por %p157, %p158
      %s161 = sadd.s32 %s160, 1
      %p164 = scmp.eq.s32.totalorder %s21, 1
      %p165 = scmp.ne.s32.totalorder %s160, %s162
      %p166 = scmp.eq.s32.totalorder %s21, 0
      %p167 = por %p165, %p166
      %p168 = scmp.ne.s32.totalorder %s160, %s162
      %p169 = scmp.eq.s32.totalorder %s26, 1
      %p170 = por %p168, %p169
      %p171 = scmp.ne.s32.totalorder %s162, %s163
      %p172 = scmp.eq.s32.totalorder %s26, 0
      %p173 = por %p171, %p172
      %p174 = scmp.ne.s32.totalorder %s162, %s163
      %p175 = scmp.eq.s32.totalorder %s27, 1
      %p176 = por %p174, %p175
      %p178 = scmp.ne.s32.totalorder %s163, %s177
      %p179 = scmp.eq.s32.totalorder %s27, 0
      %p180 = por %p178, %p179
      %s181 = ssub.s32 %s21, %s28
      %p182 = scmp.eq.s32.totalorder %s181, 0
      %s184 = sadd.s32 %s183, 1
      %s185 = scalar_select %p182, %s183, %s184
      %p188 = pneg %p182
      %p189 = scmp.eq.s32.totalorder %s21, 1
      %p190 = por %p188, %p189
      %p191 = scmp.ne.s32.totalorder %s183, %s186
      %p192 = scmp.eq.s32.totalorder %s21, 0
      %p193 = por %p191, %p192
      %p194 = scmp.ne.s32.totalorder %s183, %s186
      %p195 = scmp.eq.s32.totalorder %s26, 1
      %p196 = por %p194, %p195
      %p197 = scmp.ne.s32.totalorder %s186, %s187
      %p198 = scmp.eq.s32.totalorder %s26, 0
      %p199 = por %p197, %p198
      %p200 = scmp.ne.s32.totalorder %s186, %s187
      %p201 = scmp.eq.s32.totalorder %s27, 1
      %p202 = por %p200, %p201
      %p204 = scmp.ne.s32.totalorder %s187, %s203
      %p205 = scmp.eq.s32.totalorder %s27, 0
      %p206 = por %p204, %p205
      %p207 = scmp.le.s32.totalorder 1, %s21
      %p208 = scmp.lt.s32.totalorder %s21, 3
      %p209 = pnand %p207, %p208
      %p210 = pneg %p209
      // Predicated region
      $region9: #{tpu_custom_call.1} parent=5 // pred_check
        _
      $region10: #{tpu_custom_call.1} parent=5 // pred_check_branch
        %212 = sbr.rel (%p209) target = $region12
      $region11: #{tpu_custom_call.1} parent=5 // pred_region
        %s213 = ssub.s32 %s21, 1
        // Predicated region
        $region13: #{tpu_custom_call.1} parent=11 // pred_check
          %p214 = pneg %p68
        $region14: #{tpu_custom_call.1} parent=11 // pred_check_branch
          %216 = sbr.rel (%p214) target = $region16
        $region15: #{tpu_custom_call.1} parent=11 // pred_region
          %218 = vsyncadd [#allocation6], 0
          %s220 = sshll.u32 %s1, 4
          %s221 = int_to_ptr.hbm [resolvable:$true] %s220
          %s222 = sshll.u32 [#allocation5], 4
          %s223 = int_to_ptr.vmem [resolvable:$true] %s222
          %225 = dma.hbm_to_vmem [thread:$0]  %s221, 16, %s223, [#allocation6]
        $region16: #{tpu_custom_call.1} parent=11 // pred_fallthru
          _
        // Predicated region
        $region17: #{tpu_custom_call.1} parent=11 // pred_check
          %p226 = pneg %p89
        $region18: #{tpu_custom_call.1} parent=11 // pred_check_branch
          %228 = sbr.rel (%p226) target = $region20
        $region19: #{tpu_custom_call.1} parent=11 // pred_region
          _
        $region20: #{tpu_custom_call.1} parent=11 // pred_fallthru
          _
        // Predicated region
        $region21: #{tpu_custom_call.1} parent=11 // pred_check
          %p229 = pneg %p110
        $region22: #{tpu_custom_call.1} parent=11 // pred_check_branch
          %231 = sbr.rel (%p229) target = $region24
        $region23: #{tpu_custom_call.1} parent=11 // pred_region
          %233 = vsyncadd [#allocation6], 0
          %s234 = sshll.u32 %s3, 4
          %s235 = int_to_ptr.hbm [resolvable:$true] %s234
          %s236 = sshll.u32 [#allocation7], 4
          %s237 = int_to_ptr.vmem [resolvable:$true] %s236
          %242 = dma.hbm_to_vmem [thread:$0]  %s235, 256, %s237, [#allocation6], 64, 64, 4
        $region24: #{tpu_custom_call.1} parent=11 // pred_fallthru
          _
        // Predicated region
        $region25: #{tpu_custom_call.1} parent=11 // pred_check
          %p243 = pneg %p131
        $region26: #{tpu_custom_call.1} parent=11 // pred_check_branch
          %245 = sbr.rel (%p243) target = $region28
        $region27: #{tpu_custom_call.1} parent=11 // pred_region
          _
        $region28: #{tpu_custom_call.1} parent=11 // pred_fallthru
          _
        // Predicated region
        $region29: #{tpu_custom_call.1} parent=11 // pred_check
          %p246 = pneg %p152
        $region30: #{tpu_custom_call.1} parent=11 // pred_check_branch
          %248 = sbr.rel (%p246) target = $region32
        $region31: #{tpu_custom_call.1} parent=11 // pred_region
          %250 = vsyncadd [#allocation9], 0
          %s251 = sshll.u32 %s5, 4
          %s252 = int_to_ptr.hbm [resolvable:$true] %s251
          %s253 = sshll.u32 [#allocation8], 4
          %s254 = int_to_ptr.vmem [resolvable:$true] %s253
          %259 = dma.hbm_to_vmem [thread:$0]  %s252, 256, %s254, [#allocation9], 64, 64, 4
        $region32: #{tpu_custom_call.1} parent=11 // pred_fallthru
          _
        // Predicated region
        $region33: #{tpu_custom_call.1} parent=11 // pred_check
          %p260 = pneg %p173
        $region34: #{tpu_custom_call.1} parent=11 // pred_check_branch
          %262 = sbr.rel (%p260) target = $region36
        $region35: #{tpu_custom_call.1} parent=11 // pred_region
          _
        $region36: #{tpu_custom_call.1} parent=11 // pred_fallthru
          _
      $region12: #{tpu_custom_call.1} parent=5 // pred_fallthru
        _
      %p263 = scmp.lt.s32.totalorder %s21, 2
      // Predicated region
      $region37: #{tpu_custom_call.1} parent=5 // pred_check
        %p264 = pneg %p263
      $region38: #{tpu_custom_call.1} parent=5 // pred_check_branch
        %266 = sbr.rel (%p264) target = $region40
      $region39: #{tpu_custom_call.1} parent=5 // pred_region
        // Predicated region
        $region41: #{tpu_custom_call.1} parent=39 // pred_check
          %p267 = pneg %p41
        $region42: #{tpu_custom_call.1} parent=39 // pred_check_branch
          %269 = sbr.rel (%p267) target = $region44
        $region43: #{tpu_custom_call.1} parent=39 // pred_region
          %s270 = sand.u32 %s31, 1
          %s271 = scalar_lea.sflag [#allocation3], %s270
          %s272 = sand.u32 %s31, 1
          %s273 = smul.addr %s272, 8
          %s274 = scalar_lea.vmem [#allocation2], %s273
          %276 = vsyncadd %s271, 0
          %s277 = smul.addr %s21, 8
          %s278 = scalar_lea.hbm %s0, %s277
          %s280 = sshll.u32 %s278, 4
          %s281 = int_to_ptr.hbm [resolvable:$true] %s280
          %s282 = sshll.u32 %s274, 4
          %s283 = int_to_ptr.vmem [resolvable:$true] %s282
          %285 = dma.hbm_to_vmem [thread:$0]  %s281, 128, %s283, %s271
        $region44: #{tpu_custom_call.1} parent=39 // pred_fallthru
          _
      $region40: #{tpu_custom_call.1} parent=5 // pred_fallthru
        _
      %p286 = scmp.le.s32.totalorder 1, %s21
      %p287 = scmp.lt.s32.totalorder %s21, 3
      %p288 = pnand %p286, %p287
      %p289 = pneg %p288
      // Predicated region
      $region45: #{tpu_custom_call.1} parent=5 // pred_check
        _
      $region46: #{tpu_custom_call.1} parent=5 // pred_check_branch
        %291 = sbr.rel (%p288) target = $region48
      $region47: #{tpu_custom_call.1} parent=5 // pred_region
        %s292 = ssub.s32 %s21, 1
        %s293 = sand.u32 %s34, 1
        %s294 = scalar_lea.sflag [#allocation3], %s293
        %s295 = sand.u32 %s34, 1
        %s296 = smul.addr %s295, 8
        %s297 = scalar_lea.vmem [#allocation2], %s296
        // Predicated region
        $region49: #{tpu_custom_call.1} parent=47 // pred_check
          %p298 = pneg %p47
        $region50: #{tpu_custom_call.1} parent=47 // pred_check_branch
          %300 = sbr.rel (%p298) target = $region52
        $region51: #{tpu_custom_call.1} parent=47 // pred_region
          %302 = dma.done %s294, 128
        $region52: #{tpu_custom_call.1} parent=47 // pred_fallthru
          _
        // Predicated region
        $region53: #{tpu_custom_call.1} parent=47 // pred_check
          %p303 = pneg %p68
        $region54: #{tpu_custom_call.1} parent=47 // pred_check_branch
          %305 = sbr.rel (%p303) target = $region56
        $region55: #{tpu_custom_call.1} parent=47 // pred_region
          %307 = dma.done [#allocation6], 16
        $region56: #{tpu_custom_call.1} parent=47 // pred_fallthru
          _
        // Predicated region
        $region57: #{tpu_custom_call.1} parent=47 // pred_check
          %p308 = pneg %p110
        $region58: #{tpu_custom_call.1} parent=47 // pred_check_branch
          %310 = sbr.rel (%p308) target = $region60
        $region59: #{tpu_custom_call.1} parent=47 // pred_region
          %312 = dma.done [#allocation6], 256
        $region60: #{tpu_custom_call.1} parent=47 // pred_fallthru
          _
        // Predicated region
        $region61: #{tpu_custom_call.1} parent=47 // pred_check
          %p313 = pneg %p152
        $region62: #{tpu_custom_call.1} parent=47 // pred_check_branch
          %315 = sbr.rel (%p313) target = $region64
        $region63: #{tpu_custom_call.1} parent=47 // pred_region
          %317 = dma.done [#allocation9], 256
        $region64: #{tpu_custom_call.1} parent=47 // pred_fallthru
          _
        %s318 = sand.u32 %s34, 1
        %s319 = scalar_lea.sflag [#allocation3], %s318
        %s320 = sand.u32 %s34, 1
        %s321 = smul.addr %s320, 8
        %s322 = scalar_lea.vmem [#allocation2], %s321
        %p323 = pneg %p47
        %p324 = pneg %p44
        %p325 = pneg %p68
        %p326 = pneg %p65
        %p327 = pneg %p89
        %p328 = pneg %p86
        %p329 = pneg %p110
        %p330 = pneg %p107
        %p331 = pneg %p131
        %p332 = pneg %p128
        %p333 = pneg %p152
        %p334 = pneg %p149
        %p335 = pneg %p173
        %p336 = pneg %p170
        %p337 = pneg %p199
        %p338 = pneg %p196
        %s339 = sand.u32 %s186, 1
        %s340 = scalar_lea.sflag [#allocation4], %s339
        %s341 = sand.u32 %s186, 1
        %s342 = smul.addr %s341, 8
        %s343 = scalar_lea.vmem [#allocation10], %s342
        %v345 = vld [vmem:[%s297] sm:$0xff]
        %vm346 = vcmask 261120
        %v347 = vsel %vm346, %v345, 0.0
        %348 = vadd.xlane.f32.xlu0 %v347
        %v349 = vpop.xlane.xlu0 %348
        %v350 = vrcp.pop 32.0
        %v351 = vmul.f32 32.0, %v350
        %v352 = vsub.f32 1.0, %v351
        %v353 = vmul.f32 %v350, %v352
        %v354 = vadd.f32 %v350, %v353
        %vm355 = vweird.f32 %v350
        %v356 = vsel %vm355, %v350, %v354
        %v357 = vmul.f32 %v349, %v356
        %v358 = vsub.f32 %v345, %v357
        %v359 = vmul.f32 %v358, %v358
        %v360 = vsel %vm346, %v359, 0.0
        %361 = vadd.xlane.f32.xlu0 %v360
        %v362 = vpop.xlane.xlu0 %361
        %v363 = vmul.f32 %v362, %v356
        %v364 = vadd.f32 %v363, 1e-05
        %v365 = vrsqrt.pop %v364
        %v366 = vmul.f32 %v365, %v364
        %v367 = vmul.f32 %v366, %v365
        %v368 = vmul.f32 0.5, %v367
        %v369 = vsub.f32 1.5, %v368
        %v370 = vmul.f32 %v365, %v369
        %vm371 = vweird.f32 %v364
        %vm372 = vweird.f32 %v365
        %vm373 = vmor %vm371, %vm372
        %v374 = vsel %vm373, %v365, %v370
        %v375 = vmul.f32 %v358, %v374
        %v376 = vld [vmem:[#allocation5] sm:$0x1]
        %v378 = vperm.slane %v376, 0
        %v380 = vmul.f32 %v375, %v378
        %v381 = vld [vmem:[%s2] sm:$0x1]
        %v383 = vperm.slane %v381, 0
        %v385 = vadd.f32 %v380, %v383
        %v386 = vpack.c.bf16 %v385, %v385
        %v387 = vld [vmem:[#allocation7] sm:$0xf]
        %v388 = vld [vmem:[#allocation7 + $0x4] sm:$0xf]
        %v389 = vld [vmem:[#allocation7 + $0x8] sm:$0xf]
        %v390 = vld [vmem:[#allocation7 + $0xc] sm:$0xf]
        %v391 = vld [vmem:[%s4] sm:$0x1]
        %v393 = vperm.slane %v391, 0
        %v399 = vunpack.c.l.b16 %v387
        %v400 = vunpack.c.l.b16 %v388
        %v401 = vunpack.c.l.b16 %v389
        %v402 = vunpack.c.l.b16 %v390
        %v403 = vpack.c.b16 %v400, %v399
        %v404 = vpack.c.b16 %v402, %v401
        %v408 = vsel %vm346, %v386, 0
        %410 = vmatpush.bf16.msra.mxu0 0
        %411 = vmatpush.bf16.msra.mxu0 0
        %412 = vmatpush.bf16.msra.mxu0 0
        %413 = vmatpush.bf16.msra.mxu0 0
        %414 = vmatpush.bf16.msra.mxu0 0
        %415 = vmatpush.bf16.msra.mxu0 0
        %416 = vmatpush.bf16.msra.mxu0 %v404
        %417 = vmatpush.bf16.msra.mxu0 %v403
        %418 = vmatmul.bf16.gmra.mxu0 %v408
        %v419 = vpop.f32.mrf.mxu0
        %v420 = vadd.f32 %v393, %v419
        %v421 = vpop.f32.mrf.mxu0
        %422 = vdwg.mxu0
        %v423 = vmax.f32 %v420, 0.0
        %v424 = vpack.c.bf16 %v423, %v423
        %v425 = vld [vmem:[#allocation8] sm:$0xf]
        %v426 = vld [vmem:[#allocation8 + $0x4] sm:$0xf]
        %v427 = vld [vmem:[#allocation8 + $0x8] sm:$0xf]
        %v428 = vld [vmem:[#allocation8 + $0xc] sm:$0xf]
        %v433 = vunpack.c.l.b16 %v425
        %v434 = vunpack.c.l.b16 %v426
        %v435 = vunpack.c.l.b16 %v427
        %v436 = vunpack.c.l.b16 %v428
        %v437 = vpack.c.b16 %v434, %v433
        %v438 = vpack.c.b16 %v436, %v435
        %v442 = vsel %vm346, %v424, 0
        %444 = vmatpush.bf16.msra.mxu0 0
        %445 = vmatpush.bf16.msra.mxu0 0
        %446 = vmatpush.bf16.msra.mxu0 0
        %447 = vmatpush.bf16.msra.mxu0 0
        %448 = vmatpush.bf16.msra.mxu0 0
        %449 = vmatpush.bf16.msra.mxu0 0
        %450 = vmatpush.bf16.msra.mxu0 %v438
        %451 = vmatpush.bf16.msra.mxu0 %v437
        %452 = vmatmul.bf16.gmra.mxu0 %v442
        %v453 = vpop.f32.mrf.mxu0
        %v454 = vadd.f32 0.0, %v453
        %v455 = vpop.f32.mrf.mxu0
        %456 = vdwg.mxu0
        %v457 = vadd.f32 %v345, %v454
        %v458 = vld [vmem:[%s6] sm:$0x1]
        %v460 = vperm.slane %v458, 0
        %v462 = vadd.f32 %v457, %v460
        %463 = vst.msk [vmem:[%s343] sm:$0xff] %vm346, %v462
        %s464 = sand.u32 %s186, 1
        %s465 = scalar_lea.sflag [#allocation4], %s464
        %s466 = sand.u32 %s186, 1
        %s467 = smul.addr %s466, 8
        %s468 = scalar_lea.vmem [#allocation10], %s467
        // Predicated region
        $region65: #{tpu_custom_call.1} parent=47 // pred_check
          %p469 = pneg %p196
        $region66: #{tpu_custom_call.1} parent=47 // pred_check_branch
          %471 = sbr.rel (%p469) target = $region68
        $region67: #{tpu_custom_call.1} parent=47 // pred_region
          %473 = vsyncadd %s465, 0
          %s474 = smul.addr %s26, 8
          %s475 = scalar_lea.hbm %s7, %s474
          %s477 = sshll.u32 %s468, 4
          %s478 = int_to_ptr.vmem [resolvable:$true] %s477
          %s479 = sshll.u32 %s475, 4
          %s480 = int_to_ptr.hbm [resolvable:$true] %s479
          %482 = dma.vmem_to_hbm [thread:$0]  %s478, 128, %s480, %s465
        $region68: #{tpu_custom_call.1} parent=47 // pred_fallthru
          _
      $region48: #{tpu_custom_call.1} parent=5 // pred_fallthru
        _
      %p483 = scmp.le.s32.totalorder 2, %s21
      // Predicated region
      $region69: #{tpu_custom_call.1} parent=5 // pred_check
        %p484 = pneg %p483
      $region70: #{tpu_custom_call.1} parent=5 // pred_check_branch
        %486 = sbr.rel (%p484) target = $region72
      $region71: #{tpu_custom_call.1} parent=5 // pred_region
        %s487 = ssub.s32 %s21, 2
        // Predicated region
        $region73: #{tpu_custom_call.1} parent=71 // pred_check
          %p488 = pneg %p202
        $region74: #{tpu_custom_call.1} parent=71 // pred_check_branch
          %490 = sbr.rel (%p488) target = $region76
        $region75: #{tpu_custom_call.1} parent=71 // pred_region
          %s491 = sand.u32 %s187, 1
          %s492 = scalar_lea.sflag [#allocation4], %s491
          %s493 = sand.u32 %s187, 1
          %s494 = smul.addr %s493, 8
          %s495 = scalar_lea.vmem [#allocation10], %s494
          %497 = dma.done %s492, 128
        $region76: #{tpu_custom_call.1} parent=71 // pred_fallthru
          _
      $region72: #{tpu_custom_call.1} parent=5 // pred_fallthru
        _
    $region6: #{tpu_custom_call.1} parent=1 // loop_footer
      %s25 = sadd.s32 1, %s21
    $region7: #{tpu_custom_call.1} parent=1 // loop_footer_branch
      %20 = sbr.rel target = $region3
    $region8: #{tpu_custom_call.1} parent=1 // loop_exit
      _
    %498 = vsyncpa [#allocation3], 1
    %s499 = scalar_lea.sflag [#allocation3], 1
    %500 = vsyncpa %s499, 1
    %501 = vsyncpa [#allocation6], 1
    %502 = vsyncpa [#allocation9], 1
    %503 = vsyncpa [#allocation4], 1
    %s504 = scalar_lea.sflag [#allocation4], 1
    %505 = vsyncpa %s504, 1

// kernel: tpu_custom_call.1
$region0: #{tpu_custom_call.1}
  #allocation0 [shape = 'u32[]', space=smem, size = 0x4, offset = 0x4, fixed_abs, tag = 'smem constant byte address 0x4 - core index']
  #allocation1 [shape = 'u32[72,128]{1,0:T(1,128)}', space=vmem, size = 0x9000, scoped, tag = 'internal scratch']
  %s0 = inlined_call_operand.hbm [shape: f32[16,32], index: 0, kind: input, shape index: {}]
  %s1 = inlined_call_operand.hbm [shape: f32[1,32], index: 1, kind: input, shape index: {}]
  %s2 = inlined_call_operand.vmem [shape: f32[1,32], index: 2, kind: input, shape index: {}]
  %s3 = inlined_call_operand.hbm [shape: bf16[32,32], index: 3, kind: input, shape index: {}]
  %s4 = inlined_call_operand.vmem [shape: f32[1,32], index: 4, kind: input, shape index: {}]
  %s5 = inlined_call_operand.hbm [shape: bf16[32,32], index: 5, kind: input, shape index: {}]
  %s6 = inlined_call_operand.vmem [shape: f32[1,32], index: 6, kind: input, shape index: {}]
  %s7 = inlined_call_operand.hbm [shape: f32[16,32], index: 7, kind: output, shape index: {}]
  %s8 = sld [smem:[#allocation0]]
  $region77: #{tpu_custom_call.1} parent=0
    _
  %s10 = ssub.s32 1, %s8
  %s11 = scalar_select 0, %s10, %s8
  $region1: #{tpu_custom_call.1} parent=0
    #allocation2 [shape = 'u8[8192]{0}', space=vmem, size = 0x2000, scoped, tag = 'input window, operand 0']
    #allocation3 [shape = 's32[2]{0}', space=sflag, size = 0x8, scoped, tag = 'scoped memory for tpu_custom_call.1']
    #allocation4 [shape = 's32[2]{0}', space=sflag, size = 0x8, scoped, tag = 'scoped memory for tpu_custom_call.1']
    #allocation5 [shape = 'u8[512]{0}', space=vmem, size = 0x400, scoped, tag = 'input window, operand 1, single buffered']
    #allocation6 [shape = 's32[1]{0}', space=sflag, size = 0x4, scoped, tag = 'scoped memory for tpu_custom_call.1']
    #allocation7 [shape = 'u8[8192]{0}', space=vmem, size = 0x2000, scoped, tag = 'input window, operand 3, single buffered']
    #allocation8 [shape = 'u8[8192]{0}', space=vmem, size = 0x2000, scoped, tag = 'input window, operand 5, single buffered']
    #allocation9 [shape = 's32[1]{0}', space=sflag, size = 0x4, scoped, tag = 'scoped memory for tpu_custom_call.1']
    #allocation10 [shape = 'u8[8192]{0}', space=vmem, size = 0x2000, scoped, tag = 'output window, operand 0']
    %12 = vsyncpa [#allocation3], 0
    %s13 = scalar_lea.sflag [#allocation3], 1
    %14 = vsyncpa %s13, 0
    %15 = vsyncpa [#allocation6], 0
    %16 = vsyncpa [#allocation9], 0
    %17 = vsyncpa [#allocation4], 0
    %s18 = scalar_lea.sflag [#allocation4], 1
    %19 = vsyncpa %s18, 0
    loop: start=0, step=1, limit=4
    $region2: #{tpu_custom_call.1} parent=1 // loop_pre_header
      _
    $region3: #{tpu_custom_call.1} parent=1 // loop_header
      %s21 = sphi 0, %s25
      %p22 = scmp.ge.s32.totalorder %s21, 4
      %s31 = sphi 0, %s33
      %s34 = sphi 0, %s31
      %s35 = sphi 0, %s34
      %s51 = sphi 0, %s35
      %s55 = sphi 0, %s55
      %s57 = sphi 0, %s55
      %s58 = sphi 0, %s57
      %s72 = sphi 0, %s58
      %s76 = sphi 0, %s76
      %s78 = sphi 0, %s76
      %s79 = sphi 0, %s78
      %s93 = sphi 0, %s79
      %s97 = sphi 0, %s97
      %s99 = sphi 0, %s97
      %s100 = sphi 0, %s99
      %s114 = sphi 0, %s100
      %s118 = sphi 0, %s118
      %s120 = sphi 0, %s118
      %s121 = sphi 0, %s120
      %s135 = sphi 0, %s121
      %s139 = sphi 0, %s139
      %s141 = sphi 0, %s139
      %s142 = sphi 0, %s141
      %s156 = sphi 0, %s142
      %s160 = sphi 0, %s160
      %s162 = sphi 0, %s160
      %s163 = sphi 0, %s162
      %s177 = sphi 0, %s163
      %s183 = sphi 0, %s185
      %s186 = sphi 0, %s183
      %s187 = sphi 0, %s186
      %s203 = sphi 0, %s187
    $region4: #{tpu_custom_call.1} parent=1 // loop_header_branch
      %24 = sbr.rel (%p22) target = $region8
    $region5: #{tpu_custom_call.1} parent=1 // loop_body
      %s26 = ssub.s32 %s21, 1
      %s27 = ssub.s32 %s21, 2
      %s28 = sadd.s32 %s21, 1
      %s29 = ssub.s32 %s21, %s28
      %p30 = scmp.eq.s32.totalorder %s29, 0
      %s32 = sadd.s32 %s31, 1
      %s33 = scalar_select %p30, %s31, %s32
      %p36 = pneg %p30
      %p37 = scmp.eq.s32.totalorder %s21, 1
      %p38 = por %p36, %p37
      %p39 = scmp.ne.s32.totalorder %s31, %s34
      %p40 = scmp.eq.s32.totalorder %s21, 0
      %p41 = por %p39, %p40
      %p42 = scmp.ne.s32.totalorder %s31, %s34
      %p43 = scmp.eq.s32.totalorder %s26, 1
      %p44 = por %p42, %p43
      %p45 = scmp.ne.s32.totalorder %s34, %s35
      %p46 = scmp.eq.s32.totalorder %s26, 0
      %p47 = por %p45, %p46
      %p48 = scmp.ne.s32.totalorder %s34, %s35
      %p49 = scmp.eq.s32.totalorder %s27, 1
      %p50 = por %p48, %p49
      %p52 = scmp.ne.s32.totalorder %s35, %s51
      %p53 = scmp.eq.s32.totalorder %s27, 0
      %p54 = por %p52, %p53
      %s56 = sadd.s32 %s55, 1
      %p59 = scmp.eq.s32.totalorder %s21, 1
      %p60 = scmp.ne.s32.totalorder %s55, %s57
      %p61 = scmp.eq.s32.totalorder %s21, 0
      %p62 = por %p60, %p61
      %p63 = scmp.ne.s32.totalorder %s55, %s57
      %p64 = scmp.eq.s32.totalorder %s26, 1
      %p65 = por %p63, %p64
      %p66 = scmp.ne.s32.totalorder %s57, %s58
      %p67 = scmp.eq.s32.totalorder %s26, 0
      %p68 = por %p66, %p67
      %p69 = scmp.ne.s32.totalorder %s57, %s58
      %p70 = scmp.eq.s32.totalorder %s27, 1
      %p71 = por %p69, %p70
      %p73 = scmp.ne.s32.totalorder %s58, %s72
      %p74 = scmp.eq.s32.totalorder %s27, 0
      %p75 = por %p73, %p74
      %s77 = sadd.s32 %s76, 1
      %p80 = scmp.eq.s32.totalorder %s21, 1
      %p81 = scmp.ne.s32.totalorder %s76, %s78
      %p82 = scmp.eq.s32.totalorder %s21, 0
      %p83 = por %p81, %p82
      %p84 = scmp.ne.s32.totalorder %s76, %s78
      %p85 = scmp.eq.s32.totalorder %s26, 1
      %p86 = por %p84, %p85
      %p87 = scmp.ne.s32.totalorder %s78, %s79
      %p88 = scmp.eq.s32.totalorder %s26, 0
      %p89 = por %p87, %p88
      %p90 = scmp.ne.s32.totalorder %s78, %s79
      %p91 = scmp.eq.s32.totalorder %s27, 1
      %p92 = por %p90, %p91
      %p94 = scmp.ne.s32.totalorder %s79, %s93
      %p95 = scmp.eq.s32.totalorder %s27, 0
      %p96 = por %p94, %p95
      %s98 = sadd.s32 %s97, 1
      %p101 = scmp.eq.s32.totalorder %s21, 1
      %p102 = scmp.ne.s32.totalorder %s97, %s99
      %p103 = scmp.eq.s32.totalorder %s21, 0
      %p104 = por %p102, %p103
      %p105 = scmp.ne.s32.totalorder %s97, %s99
      %p106 = scmp.eq.s32.totalorder %s26, 1
      %p107 = por %p105, %p106
      %p108 = scmp.ne.s32.totalorder %s99, %s100
      %p109 = scmp.eq.s32.totalorder %s26, 0
      %p110 = por %p108, %p109
      %p111 = scmp.ne.s32.totalorder %s99, %s100
      %p112 = scmp.eq.s32.totalorder %s27, 1
      %p113 = por %p111, %p112
      %p115 = scmp.ne.s32.totalorder %s100, %s114
      %p116 = scmp.eq.s32.totalorder %s27, 0
      %p117 = por %p115, %p116
      %s119 = sadd.s32 %s118, 1
      %p122 = scmp.eq.s32.totalorder %s21, 1
      %p123 = scmp.ne.s32.totalorder %s118, %s120
      %p124 = scmp.eq.s32.totalorder %s21, 0
      %p125 = por %p123, %p124
      %p126 = scmp.ne.s32.totalorder %s118, %s120
      %p127 = scmp.eq.s32.totalorder %s26, 1
      %p128 = por %p126, %p127
      %p129 = scmp.ne.s32.totalorder %s120, %s121
      %p130 = scmp.eq.s32.totalorder %s26, 0
      %p131 = por %p129, %p130
      %p132 = scmp.ne.s32.totalorder %s120, %s121
      %p133 = scmp.eq.s32.totalorder %s27, 1
      %p134 = por %p132, %p133
      %p136 = scmp.ne.s32.totalorder %s121, %s135
      %p137 = scmp.eq.s32.totalorder %s27, 0
      %p138 = por %p136, %p137
      %s140 = sadd.s32 %s139, 1
      %p143 = scmp.eq.s32.totalorder %s21, 1
      %p144 = scmp.ne.s32.totalorder %s139, %s141
      %p145 = scmp.eq.s32.totalorder %s21, 0
      %p146 = por %p144, %p145
      %p147 = scmp.ne.s32.totalorder %s139, %s141
      %p148 = scmp.eq.s32.totalorder %s26, 1
      %p149 = por %p147, %p148
      %p150 = scmp.ne.s32.totalorder %s141, %s142
      %p151 = scmp.eq.s32.totalorder %s26, 0
      %p152 = por %p150, %p151
      %p153 = scmp.ne.s32.totalorder %s141, %s142
      %p154 = scmp.eq.s32.totalorder %s27, 1
      %p155 = por %p153, %p154
      %p157 = scmp.ne.s32.totalorder %s142, %s156
      %p158 = scmp.eq.s32.totalorder %s27, 0
      %p159 = por %p157, %p158
      %s161 = sadd.s32 %s160, 1
      %p164 = scmp.eq.s32.totalorder %s21, 1
      %p165 = scmp.ne.s32.totalorder %s160, %s162
      %p166 = scmp.eq.s32.totalorder %s21, 0
      %p167 = por %p165, %p166
      %p168 = scmp.ne.s32.totalorder %s160, %s162
      %p169 = scmp.eq.s32.totalorder %s26, 1
      %p170 = por %p168, %p169
      %p171 = scmp.ne.s32.totalorder %s162, %s163
      %p172 = scmp.eq.s32.totalorder %s26, 0
      %p173 = por %p171, %p172
      %p174 = scmp.ne.s32.totalorder %s162, %s163
      %p175 = scmp.eq.s32.totalorder %s27, 1
      %p176 = por %p174, %p175
      %p178 = scmp.ne.s32.totalorder %s163, %s177
      %p179 = scmp.eq.s32.totalorder %s27, 0
      %p180 = por %p178, %p179
      %s181 = ssub.s32 %s21, %s28
      %p182 = scmp.eq.s32.totalorder %s181, 0
      %s184 = sadd.s32 %s183, 1
      %s185 = scalar_select %p182, %s183, %s184
      %p188 = pneg %p182
      %p189 = scmp.eq.s32.totalorder %s21, 1
      %p190 = por %p188, %p189
      %p191 = scmp.ne.s32.totalorder %s183, %s186
      %p192 = scmp.eq.s32.totalorder %s21, 0
      %p193 = por %p191, %p192
      %p194 = scmp.ne.s32.totalorder %s183, %s186
      %p195 = scmp.eq.s32.totalorder %s26, 1
      %p196 = por %p194, %p195
      %p197 = scmp.ne.s32.totalorder %s186, %s187
      %p198 = scmp.eq.s32.totalorder %s26, 0
      %p199 = por %p197, %p198
      %p200 = scmp.ne.s32.totalorder %s186, %s187
      %p201 = scmp.eq.s32.totalorder %s27, 1
      %p202 = por %p200, %p201
      %p204 = scmp.ne.s32.totalorder %s187, %s203
      %p205 = scmp.eq.s32.totalorder %s27, 0
      %p206 = por %p204, %p205
      %p207 = scmp.le.s32.totalorder 1, %s21
      %p208 = scmp.lt.s32.totalorder %s21, 3
      %p209 = pnand %p207, %p208
      %p210 = pneg %p209
      // Predicated region
      $region9: #{tpu_custom_call.1} parent=5 // pred_check
        _
      $region10: #{tpu_custom_call.1} parent=5 // pred_check_branch
        %212 = sbr.rel (%p209) target = $region12
      $region11: #{tpu_custom_call.1} parent=5 // pred_region
        %s213 = ssub.s32 %s21, 1
        // Predicated region
        $region13: #{tpu_custom_call.1} parent=11 // pred_check
          %p214 = pneg %p68
        $region14: #{tpu_custom_call.1} parent=11 // pred_check_branch
          %216 = sbr.rel (%p214) target = $region16
        $region15: #{tpu_custom_call.1} parent=11 // pred_region
          %218 = vsyncadd [#allocation6], 0
          %s220 = sshll.u32 %s1, 4
          %s221 = int_to_ptr.hbm [resolvable:$true] %s220
          %s222 = sshll.u32 [#allocation5], 4
          %s223 = int_to_ptr.vmem [resolvable:$true] %s222
          %225 = dma.hbm_to_vmem [thread:$0]  %s221, 16, %s223, [#allocation6]
        $region16: #{tpu_custom_call.1} parent=11 // pred_fallthru
          _
        // Predicated region
        $region17: #{tpu_custom_call.1} parent=11 // pred_check
          %p226 = pneg %p89
        $region18: #{tpu_custom_call.1} parent=11 // pred_check_branch
          %228 = sbr.rel (%p226) target = $region20
        $region19: #{tpu_custom_call.1} parent=11 // pred_region
          _
        $region20: #{tpu_custom_call.1} parent=11 // pred_fallthru
          _
        // Predicated region
        $region21: #{tpu_custom_call.1} parent=11 // pred_check
          %p229 = pneg %p110
        $region22: #{tpu_custom_call.1} parent=11 // pred_check_branch
          %231 = sbr.rel (%p229) target = $region24
        $region23: #{tpu_custom_call.1} parent=11 // pred_region
          %233 = vsyncadd [#allocation6], 0
          %s234 = sshll.u32 %s3, 4
          %s235 = int_to_ptr.hbm [resolvable:$true] %s234
          %s236 = sshll.u32 [#allocation7], 4
          %s237 = int_to_ptr.vmem [resolvable:$true] %s236
          %242 = dma.hbm_to_vmem [thread:$0]  %s235, 256, %s237, [#allocation6], 64, 64, 4
        $region24: #{tpu_custom_call.1} parent=11 // pred_fallthru
          _
        // Predicated region
        $region25: #{tpu_custom_call.1} parent=11 // pred_check
          %p243 = pneg %p131
        $region26: #{tpu_custom_call.1} parent=11 // pred_check_branch
          %245 = sbr.rel (%p243) target = $region28
        $region27: #{tpu_custom_call.1} parent=11 // pred_region
          _
        $region28: #{tpu_custom_call.1} parent=11 // pred_fallthru
          _
        // Predicated region
        $region29: #{tpu_custom_call.1} parent=11 // pred_check
          %p246 = pneg %p152
        $region30: #{tpu_custom_call.1} parent=11 // pred_check_branch
          %248 = sbr.rel (%p246) target = $region32
        $region31: #{tpu_custom_call.1} parent=11 // pred_region
          %250 = vsyncadd [#allocation9], 0
          %s251 = sshll.u32 %s5, 4
          %s252 = int_to_ptr.hbm [resolvable:$true] %s251
          %s253 = sshll.u32 [#allocation8], 4
          %s254 = int_to_ptr.vmem [resolvable:$true] %s253
          %259 = dma.hbm_to_vmem [thread:$0]  %s252, 256, %s254, [#allocation9], 64, 64, 4
        $region32: #{tpu_custom_call.1} parent=11 // pred_fallthru
          _
        // Predicated region
        $region33: #{tpu_custom_call.1} parent=11 // pred_check
          %p260 = pneg %p173
        $region34: #{tpu_custom_call.1} parent=11 // pred_check_branch
          %262 = sbr.rel (%p260) target = $region36
        $region35: #{tpu_custom_call.1} parent=11 // pred_region
          _
        $region36: #{tpu_custom_call.1} parent=11 // pred_fallthru
          _
      $region12: #{tpu_custom_call.1} parent=5 // pred_fallthru
        _
      %p263 = scmp.lt.s32.totalorder %s21, 2
      // Predicated region
      $region37: #{tpu_custom_call.1} parent=5 // pred_check
        %p264 = pneg %p263
      $region38: #{tpu_custom_call.1} parent=5 // pred_check_branch
        %266 = sbr.rel (%p264) target = $region40
      $region39: #{tpu_custom_call.1} parent=5 // pred_region
        // Predicated region
        $region41: #{tpu_custom_call.1} parent=39 // pred_check
          %p267 = pneg %p41
        $region42: #{tpu_custom_call.1} parent=39 // pred_check_branch
          %269 = sbr.rel (%p267) target = $region44
        $region43: #{tpu_custom_call.1} parent=39 // pred_region
          %s270 = sand.u32 %s31, 1
          %s271 = scalar_lea.sflag [#allocation3], %s270
          %s272 = sand.u32 %s31, 1
          %s273 = smul.addr %s272, 8
          %s274 = scalar_lea.vmem [#allocation2], %s273
          %276 = vsyncadd %s271, 0
          %s277 = smul.addr %s21, 8
          %s278 = scalar_lea.hbm %s0, %s277
          %s280 = sshll.u32 %s278, 4
          %s281 = int_to_ptr.hbm [resolvable:$true] %s280
          %s282 = sshll.u32 %s274, 4
          %s283 = int_to_ptr.vmem [resolvable:$true] %s282
          %285 = dma.hbm_to_vmem [thread:$0]  %s281, 128, %s283, %s271
        $region44: #{tpu_custom_call.1} parent=39 // pred_fallthru
          _
      $region40: #{tpu_custom_call.1} parent=5 // pred_fallthru
        _
      %p286 = scmp.le.s32.totalorder 1, %s21
      %p287 = scmp.lt.s32.totalorder %s21, 3
      %p288 = pnand %p286, %p287
      %p289 = pneg %p288
      // Predicated region
      $region45: #{tpu_custom_call.1} parent=5 // pred_check
        _
      $region46: #{tpu_custom_call.1} parent=5 // pred_check_branch
        %291 = sbr.rel (%p288) target = $region48
      $region47: #{tpu_custom_call.1} parent=5 // pred_region
        %s292 = ssub.s32 %s21, 1
        %s293 = sand.u32 %s34, 1
        %s294 = scalar_lea.sflag [#allocation3], %s293
        %s295 = sand.u32 %s34, 1
        %s296 = smul.addr %s295, 8
        %s297 = scalar_lea.vmem [#allocation2], %s296
        // Predicated region
        $region49: #{tpu_custom_call.1} parent=47 // pred_check
          %p298 = pneg %p47
        $region50: #{tpu_custom_call.1} parent=47 // pred_check_branch
          %300 = sbr.rel (%p298) target = $region52
        $region51: #{tpu_custom_call.1} parent=47 // pred_region
          %302 = dma.done %s294, 128
        $region52: #{tpu_custom_call.1} parent=47 // pred_fallthru
          _
        // Predicated region
        $region53: #{tpu_custom_call.1} parent=47 // pred_check
          %p303 = pneg %p68
        $region54: #{tpu_custom_call.1} parent=47 // pred_check_branch
          %305 = sbr.rel (%p303) target = $region56
        $region55: #{tpu_custom_call.1} parent=47 // pred_region
          %307 = dma.done [#allocation6], 16
        $region56: #{tpu_custom_call.1} parent=47 // pred_fallthru
          _
        // Predicated region
        $region57: #{tpu_custom_call.1} parent=47 // pred_check
          %p308 = pneg %p110
        $region58: #{tpu_custom_call.1} parent=47 // pred_check_branch
          %310 = sbr.rel (%p308) target = $region60
        $region59: #{tpu_custom_call.1} parent=47 // pred_region
          %312 = dma.done [#allocation6], 256
        $region60: #{tpu_custom_call.1} parent=47 // pred_fallthru
          _
        // Predicated region
        $region61: #{tpu_custom_call.1} parent=47 // pred_check
          %p313 = pneg %p152
        $region62: #{tpu_custom_call.1} parent=47 // pred_check_branch
          %315 = sbr.rel (%p313) target = $region64
        $region63: #{tpu_custom_call.1} parent=47 // pred_region
          %317 = dma.done [#allocation9], 256
        $region64: #{tpu_custom_call.1} parent=47 // pred_fallthru
          _
        %s318 = sand.u32 %s34, 1
        %s319 = scalar_lea.sflag [#allocation3], %s318
        %s320 = sand.u32 %s34, 1
        %s321 = smul.addr %s320, 8
        %s322 = scalar_lea.vmem [#allocation2], %s321
        %p323 = pneg %p47
        %p324 = pneg %p44
        %p325 = pneg %p68
        %p326 = pneg %p65
        %p327 = pneg %p89
        %p328 = pneg %p86
        %p329 = pneg %p110
        %p330 = pneg %p107
        %p331 = pneg %p131
        %p332 = pneg %p128
        %p333 = pneg %p152
        %p334 = pneg %p149
        %p335 = pneg %p173
        %p336 = pneg %p170
        %p337 = pneg %p199
        %p338 = pneg %p196
        %s339 = sand.u32 %s186, 1
        %s340 = scalar_lea.sflag [#allocation4], %s339
        %s341 = sand.u32 %s186, 1
        %s342 = smul.addr %s341, 8
        %s343 = scalar_lea.vmem [#allocation10], %s342
        %v345 = vld [vmem:[%s297] sm:$0xff]
        %vm346 = vcmask 261120
        %v347 = vsel %vm346, %v345, 0.0
        %348 = vadd.xlane.f32.xlu0 %v347
        %v349 = vpop.xlane.xlu0 %348
        %v350 = vrcp.pop 32.0
        %v351 = vmul.f32 32.0, %v350
        %v352 = vsub.f32 1.0, %v351
        %v353 = vmul.f32 %v350, %v352
        %v354 = vadd.f32 %v350, %v353
        %vm355 = vweird.f32 %v350
        %v356 = vsel %vm355, %v350, %v354
        %v357 = vmul.f32 %v349, %v356
        %v358 = vsub.f32 %v345, %v357
        %v359 = vmul.f32 %v358, %v358
        %v360 = vsel %vm346, %v359, 0.0
        %361 = vadd.xlane.f32.xlu0 %v360
        %v362 = vpop.xlane.xlu0 %361
        %v363 = vmul.f32 %v362, %v356
        %v364 = vadd.f32 %v363, 1e-05
        %v365 = vrsqrt.pop %v364
        %v366 = vmul.f32 %v365, %v364
        %v367 = vmul.f32 %v366, %v365
        %v368 = vmul.f32 0.5, %v367
        %v369 = vsub.f32 1.5, %v368
        %v370 = vmul.f32 %v365, %v369
        %vm371 = vweird.f32 %v364
        %vm372 = vweird.f32 %v365
        %vm373 = vmor %vm371, %vm372
        %v374 = vsel %vm373, %v365, %v370
        %v375 = vmul.f32 %v358, %v374
        %v376 = vld [vmem:[#allocation5] sm:$0x1]
        %v378 = vperm.slane %v376, 0
        %v380 = vmul.f32 %v375, %v378
        %v381 = vld [vmem:[%s2] sm:$0x1]
        %v383 = vperm.slane %v381, 0
        %v385 = vadd.f32 %v380, %v383
        %v386 = vpack.c.bf16 %v385, %v385
        %v387 = vld [vmem:[#allocation7] sm:$0xf]
        %v388 = vld [vmem:[#allocation7 + $0x4] sm:$0xf]
        %v389 = vld [vmem:[#allocation7 + $0x8] sm:$0xf]
        %v390 = vld [vmem:[#allocation7 + $0xc] sm:$0xf]
        %v391 = vld [vmem:[%s4] sm:$0x1]
        %v393 = vperm.slane %v391, 0
        %v399 = vunpack.c.l.b16 %v387
        %v400 = vunpack.c.l.b16 %v388
        %v401 = vunpack.c.l.b16 %v389
        %v402 = vunpack.c.l.b16 %v390
        %v403 = vpack.c.b16 %v400, %v399
        %v404 = vpack.c.b16 %v402, %v401
        %v408 = vsel %vm346, %v386, 0
        %410 = vmatpush.bf16.msra.mxu0 0
        %411 = vmatpush.bf16.msra.mxu0 0
        %412 = vmatpush.bf16.msra.mxu0 0
        %413 = vmatpush.bf16.msra.mxu0 0
        %414 = vmatpush.bf16.msra.mxu0 0
        %415 = vmatpush.bf16.msra.mxu0 0
        %416 = vmatpush.bf16.msra.mxu0 %v404
        %417 = vmatpush.bf16.msra.mxu0 %v403
        %418 = vmatmul.bf16.gmra.mxu0 %v408
        %v419 = vpop.f32.mrf.mxu0
        %v420 = vadd.f32 %v393, %v419
        %v421 = vpop.f32.mrf.mxu0
        %422 = vdwg.mxu0
        %v423 = vmax.f32 %v420, 0.0
        %v424 = vpack.c.bf16 %v423, %v423
        %v425 = vld [vmem:[#allocation8] sm:$0xf]
        %v426 = vld [vmem:[#allocation8 + $0x4] sm:$0xf]
        %v427 = vld [vmem:[#allocation8 + $0x8] sm:$0xf]
        %v428 = vld [vmem:[#allocation8 + $0xc] sm:$0xf]
        %v433 = vunpack.c.l.b16 %v425
        %v434 = vunpack.c.l.b16 %v426
        %v435 = vunpack.c.l.b16 %v427
        %v436 = vunpack.c.l.b16 %v428
        %v437 = vpack.c.b16 %v434, %v433
        %v438 = vpack.c.b16 %v436, %v435
        %v442 = vsel %vm346, %v424, 0
        %444 = vmatpush.bf16.msra.mxu0 0
        %445 = vmatpush.bf16.msra.mxu0 0
        %446 = vmatpush.bf16.msra.mxu0 0
        %447 = vmatpush.bf16.msra.mxu0 0
        %448 = vmatpush.bf16.msra.mxu0 0
        %449 = vmatpush.bf16.msra.mxu0 0
        %450 = vmatpush.bf16.msra.mxu0 %v438
        %451 = vmatpush.bf16.msra.mxu0 %v437
        %452 = vmatmul.bf16.gmra.mxu0 %v442
        %v453 = vpop.f32.mrf.mxu0
        %v454 = vadd.f32 0.0, %v453
        %v455 = vpop.f32.mrf.mxu0
        %456 = vdwg.mxu0
        %v457 = vadd.f32 %v345, %v454
        %v458 = vld [vmem:[%s6] sm:$0x1]
        %v460 = vperm.slane %v458, 0
        %v462 = vadd.f32 %v457, %v460
        %463 = vst.msk [vmem:[%s343] sm:$0xff] %vm346, %v462
        %s464 = sand.u32 %s186, 1
        %s465 = scalar_lea.sflag [#allocation4], %s464
        %s466 = sand.u32 %s186, 1
        %s467 = smul.addr %s466, 8
        %s468 = scalar_lea.vmem [#allocation10], %s467
        // Predicated region
        $region65: #{tpu_custom_call.1} parent=47 // pred_check
          %p469 = pneg %p196
        $region66: #{tpu_custom_call.1} parent=47 // pred_check_branch
          %471 = sbr.rel (%p469) target = $region68
        $region67: #{tpu_custom_call.1} parent=47 // pred_region
          %473 = vsyncadd %s465, 0
          %s474 = smul.addr %s26, 8
          %s475 = scalar_lea.hbm %s7, %s474
          %s477 = sshll.u32 %s468, 4
          %s478 = int_to_ptr.vmem [resolvable:$true] %s477
          %s479 = sshll.u32 %s475, 4
          %s480 = int_to_ptr.hbm [resolvable:$true] %s479
          %482 = dma.vmem_to_hbm [thread:$0]  %s478, 128, %s480, %s465
        $region68: #{tpu_custom_call.1} parent=47 // pred_fallthru
          _
      $region48: #{tpu_custom_call.1} parent=5 // pred_fallthru
        _
      %p483 = scmp.le.s32.totalorder 2, %s21
      // Predicated region
      $region69: #{tpu_custom_call.1} parent=5 // pred_check
        %p484 = pneg %p483
      $region70: #{tpu_custom_call.1} parent=5 // pred_check_branch
        %486 = sbr.rel (%p484) target = $region72
      $region71: #{tpu_custom_call.1} parent=5 // pred_region
        %s487 = ssub.s32 %s21, 2
        // Predicated region
        $region73: #{tpu_custom_call.1} parent=71 // pred_check
          %p488 = pneg %p202
        $region74: #{tpu_custom_call.1} parent=71 // pred_check_branch
          %490 = sbr.rel (%p488) target = $region76
        $region75: #{tpu_custom_call.1} parent=71 // pred_region
          %s491 = sand.u32 %s187, 1
          %s492 = scalar_lea.sflag [#allocation4], %s491
          %s493 = sand.u32 %s187, 1
          %s494 = smul.addr %s493, 8
          %s495 = scalar_lea.vmem [#allocation10], %s494
          %497 = dma.done %s492, 128
        $region76: #{tpu_custom_call.1} parent=71 // pred_fallthru
          _
      $region72: #{tpu_custom_call.1} parent=5 // pred_fallthru
        _
    $region6: #{tpu_custom_call.1} parent=1 // loop_footer
      %s25 = sadd.s32 1, %s21
    $region7: #{tpu_custom_call.1} parent=1 // loop_footer_branch
      %20 = sbr.rel target = $region3
    $region8: #{tpu_custom_call.1} parent=1 // loop_exit
      _
    %498 = vsyncpa [#allocation3], 1
    %s499 = scalar_lea.sflag [#allocation3], 1
    %500 = vsyncpa %s499, 1
    %501 = vsyncpa [#allocation6], 1
    %502 = vsyncpa [#allocation9], 1
    %503 = vsyncpa [#allocation4], 1
    %s504 = scalar_lea.sflag [#allocation4], 1
    %505 = vsyncpa %s504, 1

</llo_original>
